<compile_context>
chip_gen: v7x
topology: tpu7x:2x2x1
jax: 0.10.0
libtpu: 0.0.40
codegen_flags: <defaults>
</compile_context>

<pallas_src>
import functools

import jax
import jax.numpy as jnp
from jax.experimental import pallas as pl
from jax.experimental.pallas import tpu as pltpu


def _rup(a, m):
    return (a + m - 1) // m * m


# ------------------------------ fused kernel --------------------------------

def _fused_ae_kernel(x_ref, w_ref, v_ref, o_ref, *, dims, offs, acts, ln_eps):
    """Fully fused 8-layer autoencoder forward on one batch tile.

    x_ref : (tb, D0) f32   activations (batch on sublanes, features on lanes)
    w_ref : (R, L)  bf16   all BN-folded weight matrices packed row-wise
    v_ref : (Vr, L) f32    rows 0..n-1 = biases, row n = LN gamma, n+1 = LN beta
    o_ref : (tb, D0) f32   softmax output
    """
    n = len(dims)
    h = x_ref[...]                                      # f32 (tb, D0)
    for li in range(n):
        din, dout = dims[li]
        off = offs[li]
        w = w_ref[off:off + din, 0:dout]                # bf16 (din, dout)
        b = v_ref[li:li + 1, 0:dout]                    # f32  (1,  dout)
        # bf16 operands on the MXU, f32 accumulation.
        z = jnp.dot(h.astype(jnp.bfloat16), w,
                    preferred_element_type=jnp.float32) + b
        act = acts[li]
        if act == "relu":
            h = jnp.maximum(z, 0.0)
        elif act == "ln":
            # LayerNorm (f32); Dropout(embed_dropout) is identity in eval mode.
            g = v_ref[n:n + 1, 0:dout]
            be = v_ref[n + 1:n + 2, 0:dout]
            mu = jnp.mean(z, axis=-1, keepdims=True)
            var = jnp.mean(jnp.square(z - mu), axis=-1, keepdims=True)
            h = (z - mu) * jax.lax.rsqrt(var + ln_eps) * g + be
        else:  # softmax(dim=1)
            m = jnp.max(z, axis=-1, keepdims=True)
            e = jnp.exp(z - m)
            s = jnp.sum(e, axis=-1, keepdims=True)
            inv = pl.reciprocal(s, approx=True)         # EUP vrcp (free slot)
            inv = inv * (2.0 - s * inv)                 # Newton step -> ~f32 exact
            o_ref[...] = e * inv


# ------------------------------ packing --------------------------------------

def _layer_dims(layer_sizes):
    ls = list(layer_sizes)
    rev = ls[::-1]
    enc = [(ls[i], ls[i + 1]) for i in range(len(ls) - 1)]
    dec = [(rev[i], rev[i + 1]) for i in range(len(rev) - 1)]
    return tuple(enc + dec)


def pack_params(folded, layer_sizes):
    """Pack BN-folded params into one bf16 weight slab + one f32 vector slab."""
    dims = _layer_dims(layer_sizes)
    nl = len(layer_sizes) - 1
    wnames = [f"enc_w{i}" for i in range(nl)] + [f"dec_w{i}" for i in range(nl)]
    bnames = [f"enc_b{i}" for i in range(nl)] + [f"dec_b{i}" for i in range(nl)]

    lane = _rup(max(max(d) for d in dims), 128)
    offs, r = [], 0
    for din, _ in dims:
        offs.append(r)
        r += _rup(din, 16)                         # bf16 (16,128) tile alignment

    w_slab = jnp.zeros((_rup(r, 16), lane), jnp.bfloat16)
    for (din, dout), off, nm in zip(dims, offs, wnames):
        w_slab = w_slab.at[off:off + din, 0:dout].set(
            folded[nm].astype(jnp.bfloat16))

    vrows = _rup(len(dims) + 2, 8)
    v_slab = jnp.zeros((vrows, lane), jnp.float32)
    for i, ((din, dout), nm) in enumerate(zip(dims, bnames)):
        v_slab = v_slab.at[i, 0:dout].set(folded[nm].reshape(-1))
    dbott = layer_sizes[-1]
    v_slab = v_slab.at[len(dims), 0:dbott].set(folded["ln_g"].reshape(-1))
    v_slab = v_slab.at[len(dims) + 1, 0:dbott].set(folded["ln_b"].reshape(-1))
    return w_slab, v_slab, dims, tuple(offs)


# ------------------------------ wrapper --------------------------------------

def forward(packed, x, ln_eps, *, block_b=512):
    """Fused forward pass. x: (B, D0) float32 -> (B, D0) softmax rows."""
    w_slab, v_slab, dims, offs = packed
    B, D0 = x.shape
    n_layers = len(dims)
    acts = tuple(
        "softmax" if i == n_layers - 1
        else ("ln" if i == n_layers // 2 - 1 else "relu")
        for i in range(n_layers))

    # Batch tile: multiple of 8 sublanes; >=2 grid steps when possible so the
    # "parallel" axis can shard across v7x's two TensorCores.
    if B >= 16:
        tb = min(block_b, _rup(pl.cdiv(B, 2), 8))
    else:
        tb = _rup(max(B, 1), 8)
    n_blk = pl.cdiv(B, tb)
    Bp = n_blk * tb
    if Bp != B:
        x = jnp.pad(x, ((0, Bp - B), (0, 0)))      # padded rows sliced off below

    kernel = functools.partial(_fused_ae_kernel, dims=dims, offs=offs,
                               acts=acts, ln_eps=ln_eps)
    cp = dict(dimension_semantics=("parallel",))    # megacore sharding on v7x
    if tb >= 1024:
        cp["vmem_limit_bytes"] = 32 * 1024 * 1024   # v5e scoped default is 16 MiB

    out = pl.pallas_call(
        kernel,
        out_shape=jax.ShapeDtypeStruct((Bp, D0), jnp.float32),
        grid=(n_blk,),
        in_specs=[
            pl.BlockSpec((tb, D0), lambda i: (i, 0)),       # batch tile
            pl.BlockSpec(w_slab.shape, lambda i: (0, 0)),   # weight slab, VMEM-resident
            pl.BlockSpec(v_slab.shape, lambda i: (0, 0)),   # bias / LN-param slab
        ],
        out_specs=pl.BlockSpec((tb, D0), lambda i: (i, 0)),
        compiler_params=pltpu.CompilerParams(**cp),
    )(x, w_slab, v_slab)
    return out[:B]


# ------------------------------ parameters -----------------------------------

def _init_linear(key, d_in, d_out):
    kw, kb = jax.random.split(key)
    bound = 1.0 / jnp.sqrt(jnp.float32(d_in))
    w = jax.random.uniform(kw, (d_in, d_out), jnp.float32, -bound, bound)
    b = jax.random.uniform(kb, (1, d_out), jnp.float32, -bound, bound)
    return w, b


def _fold_bn(w, b, gamma, beta, mean, var, eps):
    """Fold eval-mode BatchNorm1d into the preceding Linear (exact)."""
    scale = gamma / jnp.sqrt(var + eps)             # (1, Dout)
    return w * scale, (b - mean) * scale + beta


def build_raw_params(key, layer_sizes, bn_eps=1e-5):
    """Raw (unfolded) params mirroring the PyTorch module at init."""
    nl = len(layer_sizes) - 1
    keys = jax.random.split(key, 2 * nl)
    p = {"bn_eps": bn_eps}
    for i in range(nl):                              # encoder linears
        p[f"enc_w{i}"], p[f"enc_b{i}"] = _init_linear(
            keys[i], layer_sizes[i], layer_sizes[i + 1])
        d = layer_sizes[i + 1]
        p[f"enc_bn{i}"] = (jnp.ones((1, d)), jnp.zeros((1, d)),
                           jnp.zeros((1, d)), jnp.ones((1, d)))  # g, b, mean, var
    p["ln_g"] = jnp.ones((1, layer_sizes[-1]), jnp.float32)
    p["ln_b"] = jnp.zeros((1, layer_sizes[-1]), jnp.float32)
    rev = list(reversed(layer_sizes))
    for i in range(nl):                              # decoder linears
        p[f"dec_w{i}"], p[f"dec_b{i}"] = _init_linear(
            keys[nl + i], rev[i], rev[i + 1])
        if i < nl - 1:
            d = rev[i + 1]
            p[f"dec_bn{i}"] = (jnp.ones((1, d)), jnp.zeros((1, d)),
                               jnp.zeros((1, d)), jnp.ones((1, d)))
    return p


def fold_params(raw, layer_sizes):
    """Fold BN running stats into the linear weights (eval mode).
    NOTE: when real checkpoint weights are loaded, re-run this fold with the
    checkpoint's running_mean/running_var/gamma/beta."""
    nl = len(layer_sizes) - 1
    eps = raw["bn_eps"]
    p = {"ln_g": raw["ln_g"], "ln_b": raw["ln_b"]}
    for i in range(nl):
        g, be, m, v = raw[f"enc_bn{i}"]
        p[f"enc_w{i}"], p[f"enc_b{i}"] = _fold_bn(
            raw[f"enc_w{i}"], raw[f"enc_b{i}"], g, be, m, v, eps)
    for i in range(nl):
        if i < nl - 1:
            g, be, m, v = raw[f"dec_bn{i}"]
            p[f"dec_w{i}"], p[f"dec_b{i}"] = _fold_bn(
                raw[f"dec_w{i}"], raw[f"dec_b{i}"], g, be, m, v, eps)
        else:
            p[f"dec_w{i}"], p[f"dec_b{i}"] = raw[f"dec_w{i}"], raw[f"dec_b{i}"]
    return p


# ------------------------------ references -----------------------------------

def forward_ref(raw, x, ln_eps, layer_sizes):
    """Pure-JAX eval-mode f32 reference matching the PyTorch module."""
    nl = len(layer_sizes) - 1
    eps = raw["bn_eps"]
    h = x
    for i in range(nl):
        z = h @ raw[f"enc_w{i}"] + raw[f"enc_b{i}"]
        g, be, m, v = raw[f"enc_bn{i}"]
        z = (z - m) / jnp.sqrt(v + eps) * g + be
        if i < nl - 1:
            h = jnp.maximum(z, 0.0)
        else:
            mu = jnp.mean(z, axis=-1, keepdims=True)
            var = jnp.mean(jnp.square(z - mu), axis=-1, keepdims=True)
            h = (z - mu) * jax.lax.rsqrt(var + ln_eps) * raw["ln_g"] + raw["ln_b"]
    for i in range(nl - 1):
        z = h @ raw[f"dec_w{i}"] + raw[f"dec_b{i}"]
        g, be, m, v = raw[f"dec_bn{i}"]
        z = (z - m) / jnp.sqrt(v + eps) * g + be
        h = jnp.maximum(z, 0.0)
    z = h @ raw[f"dec_w{nl - 1}"] + raw[f"dec_b{nl - 1}"]
    return jax.nn.softmax(z, axis=1)


def forward_ref_folded_bf16(folded, x, ln_eps, layer_sizes):
    """Reference with the kernel's exact numerics (bf16 matmul operands)."""
    nl = len(layer_sizes) - 1
    n = 2 * nl
    wnames = [f"enc_w{i}" for i in range(nl)] + [f"dec_w{i}" for i in range(nl)]
    bnames = [f"enc_b{i}" for i in range(nl)] + [f"dec_b{i}" for i in range(nl)]
    h = x
    for li in range(n):
        w = folded[wnames[li]].astype(jnp.bfloat16)
        b = folded[bnames[li]]
        z = jnp.dot(h.astype(jnp.bfloat16), w,
                    preferred_element_type=jnp.float32) + b
        if li == n // 2 - 1:
            mu = jnp.mean(z, axis=-1, keepdims=True)
            var = jnp.mean(jnp.square(z - mu), axis=-1, keepdims=True)
            h = (z - mu) * jax.lax.rsqrt(var + ln_eps) * folded["ln_g"] + folded["ln_b"]
        elif li == n - 1:
            return jax.nn.softmax(z, axis=1)
        else:
            h = jnp.maximum(z, 0.0)


# ------------------------------ main ------------------------------------------

if __name__ == "__main__":
    # config: layer_sizes, layer_norm_epsilon, embed_dropout (identity in eval)
    layer_sizes = [256, 128, 64, 32, 16]
    layer_norm_epsilon = 1e-5

    key = jax.random.PRNGKey(0)
    kx, kp = jax.random.split(key)
    batch = 8
    x = jax.random.normal(kx, (batch, layer_sizes[0]), jnp.float32)

    raw = build_raw_params(kp, layer_sizes)
    folded = fold_params(raw, layer_sizes)
    packed = pack_params(folded, layer_sizes)

    out = jax.block_until_ready(forward(packed, x, layer_norm_epsilon))

    assert out.shape == (batch, layer_sizes[0])
    assert bool(jnp.all(jnp.isfinite(out)))
    # Softmax rows sum to 1 (approx-reciprocal + Newton step is ~f32 exact).
    assert jnp.allclose(jnp.sum(out, axis=1), 1.0, atol=1e-4)
    # Exact-numerics reference (same bf16 matmul operands, f32 elementwise).
    ref_bf16 = forward_ref_folded_bf16(folded, x, layer_norm_epsilon, layer_sizes)
    assert jnp.allclose(out, ref_bf16, atol=1e-4, rtol=1e-3), \
        "mismatch vs bf16-matmul reference"
    # Loose check vs full-f32 unfolded reference (difference = bf16 rounding only).
    ref_f32 = forward_ref(raw, x, layer_norm_epsilon, layer_sizes)
    assert jnp.allclose(out, ref_f32, atol=2e-2, rtol=2e-2), \
        "mismatch vs f32 reference"

    print("KERNEL_OK")
</pallas_src>

<mosaic_0001>
module attributes {stable_mosaic.version = 11 : i64} {
  func.func @_fused_ae_kernel(%arg0: i32, %arg1: memref<8x256xf32, #tpu.memory_space<vmem>>, %arg2: memref<720x256xbf16, #tpu.memory_space<vmem>>, %arg3: memref<16x256xf32, #tpu.memory_space<vmem>>, %arg4: memref<8x256xf32, #tpu.memory_space<vmem>>) attributes {dimension_semantics = [#tpu.dimension_semantics<parallel>], iteration_bounds = array<i64: 1>, scalar_prefetch = 0 : i64, scratch_operands = 0 : i64, tpu.core_type = #tpu.core_type<tc>, window_params = [{transform_indices = @transform_0, window_bounds = array<i64: 8, 256>}, {pipeline_mode = #tpu.pipeline_mode<synchronous>, transform_indices = @transform_1, window_bounds = array<i64: 720, 256>}, {pipeline_mode = #tpu.pipeline_mode<synchronous>, transform_indices = @transform_2, window_bounds = array<i64: 16, 256>}, {transform_indices = @transform_3, window_bounds = array<i64: 8, 256>}]} {
    %c0 = arith.constant 0 : index
    %c0_0 = arith.constant 0 : index
    %0 = vector.load %arg1[%c0, %c0_0] : memref<8x256xf32, #tpu.memory_space<vmem>>, vector<8x256xf32>
    %c0_1 = arith.constant 0 : index
    %c0_2 = arith.constant 0 : index
    %1 = vector.load %arg2[%c0_1, %c0_2] : memref<720x256xbf16, #tpu.memory_space<vmem>>, vector<256x128xbf16>
    %c0_3 = arith.constant 0 : index
    %c0_4 = arith.constant 0 : index
    %2 = vector.load %arg3[%c0_3, %c0_4] : memref<16x256xf32, #tpu.memory_space<vmem>>, vector<1x128xf32>
    %3 = arith.truncf %0 : vector<8x256xf32> to vector<8x256xbf16>
    %cst = arith.constant dense<0.000000e+00> : vector<8x128xf32>
    %4 = tpu.matmul %3, %1, %cst {dimension_numbers = #tpu.dot_dimension_numbers<[1], [0], [0], [1], [0, 0, 1, 1], [], []>} : vector<8x256xbf16>, vector<256x128xbf16>, vector<8x128xf32> -> vector<8x128xf32>
    %5 = vector.broadcast %2 : vector<1x128xf32> to vector<8x128xf32>
    %6 = arith.addf %4, %5 : vector<8x128xf32>
    %cst_5 = arith.constant 0.000000e+00 : f32
    %7 = vector.broadcast %cst_5 : f32 to vector<8x128xf32>
    %8 = arith.maximumf %6, %7 : vector<8x128xf32>
    %c256 = arith.constant 256 : index
    %c0_6 = arith.constant 0 : index
    %9 = vector.load %arg2[%c256, %c0_6] : memref<720x256xbf16, #tpu.memory_space<vmem>>, vector<128x64xbf16>
    %c1 = arith.constant 1 : index
    %c0_7 = arith.constant 0 : index
    %10 = vector.load %arg3[%c1, %c0_7] : memref<16x256xf32, #tpu.memory_space<vmem>>, vector<1x64xf32>
    %11 = arith.truncf %8 : vector<8x128xf32> to vector<8x128xbf16>
    %cst_8 = arith.constant dense<0.000000e+00> : vector<8x64xf32>
    %12 = tpu.matmul %11, %9, %cst_8 {dimension_numbers = #tpu.dot_dimension_numbers<[1], [0], [0], [1], [0, 0, 1, 1], [], []>} : vector<8x128xbf16>, vector<128x64xbf16>, vector<8x64xf32> -> vector<8x64xf32>
    %13 = vector.broadcast %10 : vector<1x64xf32> to vector<8x64xf32>
    %14 = arith.addf %12, %13 : vector<8x64xf32>
    %cst_9 = arith.constant 0.000000e+00 : f32
    %15 = vector.broadcast %cst_9 : f32 to vector<8x64xf32>
    %16 = arith.maximumf %14, %15 : vector<8x64xf32>
    %c384 = arith.constant 384 : index
    %c0_10 = arith.constant 0 : index
    %17 = vector.load %arg2[%c384, %c0_10] : memref<720x256xbf16, #tpu.memory_space<vmem>>, vector<64x32xbf16>
    %c2 = arith.constant 2 : index
    %c0_11 = arith.constant 0 : index
    %18 = vector.load %arg3[%c2, %c0_11] : memref<16x256xf32, #tpu.memory_space<vmem>>, vector<1x32xf32>
    %19 = arith.truncf %16 : vector<8x64xf32> to vector<8x64xbf16>
    %cst_12 = arith.constant dense<0.000000e+00> : vector<8x32xf32>
    %20 = tpu.matmul %19, %17, %cst_12 {dimension_numbers = #tpu.dot_dimension_numbers<[1], [0], [0], [1], [0, 0, 1, 1], [], []>} : vector<8x64xbf16>, vector<64x32xbf16>, vector<8x32xf32> -> vector<8x32xf32>
    %21 = vector.broadcast %18 : vector<1x32xf32> to vector<8x32xf32>
    %22 = arith.addf %20, %21 : vector<8x32xf32>
    %cst_13 = arith.constant 0.000000e+00 : f32
    %23 = vector.broadcast %cst_13 : f32 to vector<8x32xf32>
    %24 = arith.maximumf %22, %23 : vector<8x32xf32>
    %c448 = arith.constant 448 : index
    %c0_14 = arith.constant 0 : index
    %25 = vector.load %arg2[%c448, %c0_14] : memref<720x256xbf16, #tpu.memory_space<vmem>>, vector<32x16xbf16>
    %c3 = arith.constant 3 : index
    %c0_15 = arith.constant 0 : index
    %26 = vector.load %arg3[%c3, %c0_15] : memref<16x256xf32, #tpu.memory_space<vmem>>, vector<1x16xf32>
    %27 = arith.truncf %24 : vector<8x32xf32> to vector<8x32xbf16>
    %cst_16 = arith.constant dense<0.000000e+00> : vector<8x16xf32>
    %28 = tpu.matmul %27, %25, %cst_16 {dimension_numbers = #tpu.dot_dimension_numbers<[1], [0], [0], [1], [0, 0, 1, 1], [], []>} : vector<8x32xbf16>, vector<32x16xbf16>, vector<8x16xf32> -> vector<8x16xf32>
    %29 = vector.broadcast %26 : vector<1x16xf32> to vector<8x16xf32>
    %30 = arith.addf %28, %29 : vector<8x16xf32>
    %c8 = arith.constant 8 : index
    %c0_17 = arith.constant 0 : index
    %31 = vector.load %arg3[%c8, %c0_17] : memref<16x256xf32, #tpu.memory_space<vmem>>, vector<1x16xf32>
    %c9 = arith.constant 9 : index
    %c0_18 = arith.constant 0 : index
    %32 = vector.load %arg3[%c9, %c0_18] : memref<16x256xf32, #tpu.memory_space<vmem>>, vector<1x16xf32>
    %cst_19 = arith.constant dense<0.000000e+00> : vector<8xf32>
    %33 = vector.multi_reduction <add>, %30, %cst_19 [1] : vector<8x16xf32> to vector<8xf32>
    %34 = vector.shape_cast %33 : vector<8xf32> to vector<8x1xf32>
    %cst_20 = arith.constant 1.600000e+01 : f32
    %35 = vector.broadcast %cst_20 : f32 to vector<8x1xf32>
    %36 = arith.divf %34, %35 : vector<8x1xf32>
    %37 = vector.broadcast %36 : vector<8x1xf32> to vector<8x16xf32>
    %38 = arith.subf %30, %37 : vector<8x16xf32>
    %39 = arith.mulf %38, %38 : vector<8x16xf32>
    %cst_21 = arith.constant dense<0.000000e+00> : vector<8xf32>
    %40 = vector.multi_reduction <add>, %39, %cst_21 [1] : vector<8x16xf32> to vector<8xf32>
    %41 = vector.shape_cast %40 : vector<8xf32> to vector<8x1xf32>
    %cst_22 = arith.constant 1.600000e+01 : f32
    %42 = vector.broadcast %cst_22 : f32 to vector<8x1xf32>
    %43 = arith.divf %41, %42 : vector<8x1xf32>
    %44 = vector.broadcast %36 : vector<8x1xf32> to vector<8x16xf32>
    %45 = arith.subf %30, %44 : vector<8x16xf32>
    %cst_23 = arith.constant 9.99999974E-6 : f32
    %46 = vector.broadcast %cst_23 : f32 to vector<8x1xf32>
    %47 = arith.addf %43, %46 : vector<8x1xf32>
    %48 = math.rsqrt %47 : vector<8x1xf32>
    %49 = vector.broadcast %48 : vector<8x1xf32> to vector<8x16xf32>
    %50 = arith.mulf %45, %49 : vector<8x16xf32>
    %51 = vector.broadcast %31 : vector<1x16xf32> to vector<8x16xf32>
    %52 = arith.mulf %50, %51 : vector<8x16xf32>
    %53 = vector.broadcast %32 : vector<1x16xf32> to vector<8x16xf32>
    %54 = arith.addf %52, %53 : vector<8x16xf32>
    %c480 = arith.constant 480 : index
    %c0_24 = arith.constant 0 : index
    %55 = vector.load %arg2[%c480, %c0_24] : memref<720x256xbf16, #tpu.memory_space<vmem>>, vector<16x32xbf16>
    %c4 = arith.constant 4 : index
    %c0_25 = arith.constant 0 : index
    %56 = vector.load %arg3[%c4, %c0_25] : memref<16x256xf32, #tpu.memory_space<vmem>>, vector<1x32xf32>
    %57 = arith.truncf %54 : vector<8x16xf32> to vector<8x16xbf16>
    %cst_26 = arith.constant dense<0.000000e+00> : vector<8x32xf32>
    %58 = tpu.matmul %57, %55, %cst_26 {dimension_numbers = #tpu.dot_dimension_numbers<[1], [0], [0], [1], [0, 0, 1, 1], [], []>} : vector<8x16xbf16>, vector<16x32xbf16>, vector<8x32xf32> -> vector<8x32xf32>
    %59 = vector.broadcast %56 : vector<1x32xf32> to vector<8x32xf32>
    %60 = arith.addf %58, %59 : vector<8x32xf32>
    %cst_27 = arith.constant 0.000000e+00 : f32
    %61 = vector.broadcast %cst_27 : f32 to vector<8x32xf32>
    %62 = arith.maximumf %60, %61 : vector<8x32xf32>
    %c496 = arith.constant 496 : index
    %c0_28 = arith.constant 0 : index
    %63 = vector.load %arg2[%c496, %c0_28] : memref<720x256xbf16, #tpu.memory_space<vmem>>, vector<32x64xbf16>
    %c5 = arith.constant 5 : index
    %c0_29 = arith.constant 0 : index
    %64 = vector.load %arg3[%c5, %c0_29] : memref<16x256xf32, #tpu.memory_space<vmem>>, vector<1x64xf32>
    %65 = arith.truncf %62 : vector<8x32xf32> to vector<8x32xbf16>
    %cst_30 = arith.constant dense<0.000000e+00> : vector<8x64xf32>
    %66 = tpu.matmul %65, %63, %cst_30 {dimension_numbers = #tpu.dot_dimension_numbers<[1], [0], [0], [1], [0, 0, 1, 1], [], []>} : vector<8x32xbf16>, vector<32x64xbf16>, vector<8x64xf32> -> vector<8x64xf32>
    %67 = vector.broadcast %64 : vector<1x64xf32> to vector<8x64xf32>
    %68 = arith.addf %66, %67 : vector<8x64xf32>
    %cst_31 = arith.constant 0.000000e+00 : f32
    %69 = vector.broadcast %cst_31 : f32 to vector<8x64xf32>
    %70 = arith.maximumf %68, %69 : vector<8x64xf32>
    %c528 = arith.constant 528 : index
    %c0_32 = arith.constant 0 : index
    %71 = vector.load %arg2[%c528, %c0_32] : memref<720x256xbf16, #tpu.memory_space<vmem>>, vector<64x128xbf16>
    %c6 = arith.constant 6 : index
    %c0_33 = arith.constant 0 : index
    %72 = vector.load %arg3[%c6, %c0_33] : memref<16x256xf32, #tpu.memory_space<vmem>>, vector<1x128xf32>
    %73 = arith.truncf %70 : vector<8x64xf32> to vector<8x64xbf16>
    %cst_34 = arith.constant dense<0.000000e+00> : vector<8x128xf32>
    %74 = tpu.matmul %73, %71, %cst_34 {dimension_numbers = #tpu.dot_dimension_numbers<[1], [0], [0], [1], [0, 0, 1, 1], [], []>} : vector<8x64xbf16>, vector<64x128xbf16>, vector<8x128xf32> -> vector<8x128xf32>
    %75 = vector.broadcast %72 : vector<1x128xf32> to vector<8x128xf32>
    %76 = arith.addf %74, %75 : vector<8x128xf32>
    %cst_35 = arith.constant 0.000000e+00 : f32
    %77 = vector.broadcast %cst_35 : f32 to vector<8x128xf32>
    %78 = arith.maximumf %76, %77 : vector<8x128xf32>
    %c592 = arith.constant 592 : index
    %c0_36 = arith.constant 0 : index
    %79 = vector.load %arg2[%c592, %c0_36] : memref<720x256xbf16, #tpu.memory_space<vmem>>, vector<128x256xbf16>
    %c7 = arith.constant 7 : index
    %c0_37 = arith.constant 0 : index
    %80 = vector.load %arg3[%c7, %c0_37] : memref<16x256xf32, #tpu.memory_space<vmem>>, vector<1x256xf32>
    %81 = arith.truncf %78 : vector<8x128xf32> to vector<8x128xbf16>
    %cst_38 = arith.constant dense<0.000000e+00> : vector<8x256xf32>
    %82 = tpu.matmul %81, %79, %cst_38 {dimension_numbers = #tpu.dot_dimension_numbers<[1], [0], [0], [1], [0, 0, 1, 1], [], []>} : vector<8x128xbf16>, vector<128x256xbf16>, vector<8x256xf32> -> vector<8x256xf32>
    %83 = vector.broadcast %80 : vector<1x256xf32> to vector<8x256xf32>
    %84 = arith.addf %82, %83 : vector<8x256xf32>
    %cst_39 = arith.constant dense<0xFF800000> : vector<8xf32>
    %85 = vector.multi_reduction <maximumf>, %84, %cst_39 [1] : vector<8x256xf32> to vector<8xf32>
    %86 = vector.shape_cast %85 : vector<8xf32> to vector<8x1xf32>
    %87 = vector.broadcast %86 : vector<8x1xf32> to vector<8x256xf32>
    %88 = arith.subf %84, %87 : vector<8x256xf32>
    %89 = math.exp %88 : vector<8x256xf32>
    %cst_40 = arith.constant dense<0.000000e+00> : vector<8xf32>
    %90 = vector.multi_reduction <add>, %89, %cst_40 [1] : vector<8x256xf32> to vector<8xf32>
    %91 = vector.shape_cast %90 : vector<8xf32> to vector<8x1xf32>
    %92 = tpu.reciprocal %91 {approx = true} : vector<8x1xf32> -> vector<8x1xf32>
    %93 = arith.mulf %91, %92 : vector<8x1xf32>
    %cst_41 = arith.constant 2.000000e+00 : f32
    %94 = vector.broadcast %cst_41 : f32 to vector<8x1xf32>
    %95 = arith.subf %94, %93 : vector<8x1xf32>
    %96 = arith.mulf %92, %95 : vector<8x1xf32>
    %97 = vector.broadcast %96 : vector<8x1xf32> to vector<8x256xf32>
    %98 = arith.mulf %89, %97 : vector<8x256xf32>
    %c0_42 = arith.constant 0 : index
    %c0_43 = arith.constant 0 : index
    %99 = vector.load %arg4[%c0_42, %c0_43] : memref<8x256xf32, #tpu.memory_space<vmem>>, vector<8x256xf32>
    tpu.vector_store %arg4[%c0_42, %c0_43], %98 {strides = array<i32>} : memref<8x256xf32, #tpu.memory_space<vmem>>, vector<8x256xf32>,
    return
  }
  func.func @transform_0(%arg0: i32) -> (i32, i32) {
    %c0_i32 = arith.constant 0 : i32
    %c0_i32_0 = arith.constant 0 : i32
    return %arg0, %c0_i32 : i32, i32
  }
  func.func @transform_1(%arg0: i32) -> (i32, i32) {
    %c0_i32 = arith.constant 0 : i32
    %c0_i32_0 = arith.constant 0 : i32
    %c0_i32_1 = arith.constant 0 : i32
    return %c0_i32, %c0_i32_0 : i32, i32
  }
  func.func @transform_2(%arg0: i32) -> (i32, i32) {
    %c0_i32 = arith.constant 0 : i32
    %c0_i32_0 = arith.constant 0 : i32
    %c0_i32_1 = arith.constant 0 : i32
    return %c0_i32, %c0_i32_0 : i32, i32
  }
  func.func @transform_3(%arg0: i32) -> (i32, i32) {
    %c0_i32 = arith.constant 0 : i32
    %c0_i32_0 = arith.constant 0 : i32
    return %arg0, %c0_i32 : i32, i32
  }
}

</mosaic_0001>

<llo_original>
// kernel: tpu_custom_call.1
$region0: #{tpu_custom_call.1}
  #allocation0 [shape = 'u32[]', space=smem, size = 0x4, offset = 0x4, fixed_abs, tag = 'smem constant byte address 0x4 - core index']
  #allocation1 [shape = 'u32[144,128]{1,0:T(1,128)}', space=vmem, size = 0x12000, scoped, tag = 'internal scratch']
  %s0 = inlined_call_operand.hbm [shape: f32[8,256], index: 0, kind: input, shape index: {}]
  %s1 = inlined_call_operand.hbm [shape: bf16[720,256], index: 1, kind: input, shape index: {}]
  %s2 = inlined_call_operand.hbm [shape: f32[16,256], index: 2, kind: input, shape index: {}]
  %s3 = inlined_call_operand.hbm [shape: f32[8,256], index: 3, kind: output, shape index: {}]
  %s4 = sld [smem:[#allocation0]]
  $region34: #{tpu_custom_call.1} parent=0
    _
  %s6 = ssub.s32 1, %s4
  %s7 = scalar_select 0, %s6, %s4
  $region1: #{tpu_custom_call.1} parent=0
    #allocation2 [shape = 'u8[8192]{0}', space=vmem, size = 0x2000, scoped, tag = 'input window, operand 0, single buffered']
    #allocation3 [shape = 's32[1]{0}', space=sflag, size = 0x4, scoped, tag = 'scoped memory for tpu_custom_call.1']
    #allocation4 [shape = 's32[1]{0}', space=sflag, size = 0x4, scoped, tag = 'scoped memory for tpu_custom_call.1']
    #allocation5 [shape = 'u8[368640]{0}', space=vmem, size = 0x5a000, scoped, tag = 'input window, operand 1, single buffered']
    #allocation6 [shape = 's32[1]{0}', space=sflag, size = 0x4, scoped, tag = 'scoped memory for tpu_custom_call.1']
    #allocation7 [shape = 'u8[16384]{0}', space=vmem, size = 0x4000, scoped, tag = 'input window, operand 2, single buffered']
    #allocation8 [shape = 'u8[8192]{0}', space=vmem, size = 0x2000, scoped, tag = 'output window, operand 0, single buffered']
    %8 = vsyncpa [#allocation3], 0
    %9 = vsyncpa [#allocation6], 0
    %10 = vsyncpa [#allocation4], 0
    // Predicated region
    $region2: #{tpu_custom_call.1} parent=1 // pred_check
      _
    $region3: #{tpu_custom_call.1} parent=1 // pred_check_branch
      %12 = sbr.rel (0) target = $region5
    $region4: #{tpu_custom_call.1} parent=1 // pred_region
      %s14 = ssub.s32 256, 256
      %15 = vsyncadd [#allocation3], %s14
      %s17 = sshll.u32 [#allocation2], 4
      %s18 = int_to_ptr.vmem [resolvable:$true] %s17
      %20 = dma.hbm_to_vmem [thread:$0]  %s0, 256, %s18, [#allocation3]
    $region5: #{tpu_custom_call.1} parent=1 // pred_fallthru
      _
    // Predicated region
    $region6: #{tpu_custom_call.1} parent=1 // pred_check
      _
    $region7: #{tpu_custom_call.1} parent=1 // pred_check_branch
      %22 = sbr.rel (0) target = $region9
    $region8: #{tpu_custom_call.1} parent=1 // pred_region
      %s24 = ssub.s32 11520, 11520
      %25 = vsyncadd [#allocation6], %s24
      %s26 = sshll.u32 [#allocation5], 4
      %s27 = int_to_ptr.vmem [resolvable:$true] %s26
      %32 = dma.hbm_to_vmem [thread:$0]  %s1, 11520, %s27, [#allocation6], 128, 128, 8
    $region9: #{tpu_custom_call.1} parent=1 // pred_fallthru
      _
    // Predicated region
    $region10: #{tpu_custom_call.1} parent=1 // pred_check
      _
    $region11: #{tpu_custom_call.1} parent=1 // pred_check_branch
      %34 = sbr.rel (0) target = $region13
    $region12: #{tpu_custom_call.1} parent=1 // pred_region
      %s36 = ssub.s32 512, 512
      %37 = vsyncadd [#allocation6], %s36
      %s38 = sshll.u32 [#allocation7], 4
      %s39 = int_to_ptr.vmem [resolvable:$true] %s38
      %44 = dma.hbm_to_vmem [thread:$0]  %s2, 512, %s39, [#allocation6], 256, 256, 16
    $region13: #{tpu_custom_call.1} parent=1 // pred_fallthru
      _
    // Predicated region
    $region14: #{tpu_custom_call.1} parent=1 // pred_check
      _
    $region15: #{tpu_custom_call.1} parent=1 // pred_check_branch
      %46 = sbr.rel (0) target = $region17
    $region16: #{tpu_custom_call.1} parent=1 // pred_region
      %47 = dma.done [#allocation3], 256
    $region17: #{tpu_custom_call.1} parent=1 // pred_fallthru
      _
    // Predicated region
    $region18: #{tpu_custom_call.1} parent=1 // pred_check
      _
    $region19: #{tpu_custom_call.1} parent=1 // pred_check_branch
      %49 = sbr.rel (0) target = $region21
    $region20: #{tpu_custom_call.1} parent=1 // pred_region
      %50 = dma.done [#allocation6], 11520
    $region21: #{tpu_custom_call.1} parent=1 // pred_fallthru
      _
    // Predicated region
    $region22: #{tpu_custom_call.1} parent=1 // pred_check
      _
    $region23: #{tpu_custom_call.1} parent=1 // pred_check_branch
      %52 = sbr.rel (0) target = $region25
    $region24: #{tpu_custom_call.1} parent=1 // pred_region
      %53 = dma.done [#allocation6], 512
    $region25: #{tpu_custom_call.1} parent=1 // pred_fallthru
      _
    %v55 = vld [vmem:[#allocation2] sm:$0xff]
    %v56 = vld [vmem:[#allocation2 + $0x8] sm:$0xff]
    %v57 = vld [vmem:[#allocation5] sm:$0xf]
    %v58 = vld [vmem:[#allocation5 + $0x8] sm:$0xf]
    %v59 = vld [vmem:[#allocation5 + $0x10] sm:$0xf]
    %v60 = vld [vmem:[#allocation5 + $0x18] sm:$0xf]
    %v61 = vld [vmem:[#allocation5 + $0x20] sm:$0xf]
    %v62 = vld [vmem:[#allocation5 + $0x28] sm:$0xf]
    %v63 = vld [vmem:[#allocation5 + $0x30] sm:$0xf]
    %v64 = vld [vmem:[#allocation5 + $0x38] sm:$0xf]
    %v65 = vld [vmem:[#allocation5 + $0x40] sm:$0xf]
    %v66 = vld [vmem:[#allocation5 + $0x48] sm:$0xf]
    %v67 = vld [vmem:[#allocation5 + $0x50] sm:$0xf]
    %v68 = vld [vmem:[#allocation5 + $0x58] sm:$0xf]
    %v69 = vld [vmem:[#allocation5 + $0x60] sm:$0xf]
    %v70 = vld [vmem:[#allocation5 + $0x68] sm:$0xf]
    %v71 = vld [vmem:[#allocation5 + $0x70] sm:$0xf]
    %v72 = vld [vmem:[#allocation5 + $0x78] sm:$0xf]
    %v73 = vld [vmem:[#allocation5 + $0x80] sm:$0xf]
    %v74 = vld [vmem:[#allocation5 + $0x88] sm:$0xf]
    %v75 = vld [vmem:[#allocation5 + $0x90] sm:$0xf]
    %v76 = vld [vmem:[#allocation5 + $0x98] sm:$0xf]
    %v77 = vld [vmem:[#allocation5 + $0xa0] sm:$0xf]
    %v78 = vld [vmem:[#allocation5 + $0xa8] sm:$0xf]
    %v79 = vld [vmem:[#allocation5 + $0xb0] sm:$0xf]
    %v80 = vld [vmem:[#allocation5 + $0xb8] sm:$0xf]
    %v81 = vld [vmem:[#allocation5 + $0xc0] sm:$0xf]
    %v82 = vld [vmem:[#allocation5 + $0xc8] sm:$0xf]
    %v83 = vld [vmem:[#allocation5 + $0xd0] sm:$0xf]
    %v84 = vld [vmem:[#allocation5 + $0xd8] sm:$0xf]
    %v85 = vld [vmem:[#allocation5 + $0xe0] sm:$0xf]
    %v86 = vld [vmem:[#allocation5 + $0xe8] sm:$0xf]
    %v87 = vld [vmem:[#allocation5 + $0xf0] sm:$0xf]
    %v88 = vld [vmem:[#allocation5 + $0xf8] sm:$0xf]
    %v89 = vld [vmem:[#allocation7] ss:$0 sm:$0xff]
    %v90 = vpack.c.bf16 %v55, %v55
    %v91 = vpack.c.bf16 %v56, %v56
    %v124 = vunpack.c.l.b16 %v57
    %v125 = vunpack.c.l.b16 %v58
    %v126 = vunpack.c.l.b16 %v59
    %v127 = vunpack.c.l.b16 %v60
    %v128 = vunpack.c.l.b16 %v61
    %v129 = vunpack.c.l.b16 %v62
    %v130 = vunpack.c.l.b16 %v63
    %v131 = vunpack.c.l.b16 %v64
    %v132 = vunpack.c.l.b16 %v65
    %v133 = vunpack.c.l.b16 %v66
    %v134 = vunpack.c.l.b16 %v67
    %v135 = vunpack.c.l.b16 %v68
    %v136 = vunpack.c.l.b16 %v69
    %v137 = vunpack.c.l.b16 %v70
    %v138 = vunpack.c.l.b16 %v71
    %v139 = vunpack.c.l.b16 %v72
    %v140 = vunpack.c.l.b16 %v73
    %v141 = vunpack.c.l.b16 %v74
    %v142 = vunpack.c.l.b16 %v75
    %v143 = vunpack.c.l.b16 %v76
    %v144 = vunpack.c.l.b16 %v77
    %v145 = vunpack.c.l.b16 %v78
    %v146 = vunpack.c.l.b16 %v79
    %v147 = vunpack.c.l.b16 %v80
    %v148 = vunpack.c.l.b16 %v81
    %v149 = vunpack.c.l.b16 %v82
    %v150 = vunpack.c.l.b16 %v83
    %v151 = vunpack.c.l.b16 %v84
    %v152 = vunpack.c.l.b16 %v85
    %v153 = vunpack.c.l.b16 %v86
    %v154 = vunpack.c.l.b16 %v87
    %v155 = vunpack.c.l.b16 %v88
    %v156 = vpack.c.b16 %v125, %v124
    %v157 = vpack.c.b16 %v127, %v126
    %v158 = vpack.c.b16 %v129, %v128
    %v159 = vpack.c.b16 %v131, %v130
    %v160 = vpack.c.b16 %v133, %v132
    %v161 = vpack.c.b16 %v135, %v134
    %v162 = vpack.c.b16 %v137, %v136
    %v163 = vpack.c.b16 %v139, %v138
    %v164 = vpack.c.b16 %v141, %v140
    %v165 = vpack.c.b16 %v143, %v142
    %v166 = vpack.c.b16 %v145, %v144
    %v167 = vpack.c.b16 %v147, %v146
    %v168 = vpack.c.b16 %v149, %v148
    %v169 = vpack.c.b16 %v151, %v150
    %v170 = vpack.c.b16 %v153, %v152
    %v171 = vpack.c.b16 %v155, %v154
    %188 = vmatprep.subr.bf16.mxu0 0
    %189 = vmatpush1.bf16.msra.mxu0 %v156
    %190 = vmatprep.subr.bf16.mxu0 0
    %191 = vmatpush1.bf16.msra.mxu0 %v157
    %192 = vmatprep.subr.bf16.mxu0 0
    %193 = vmatpush1.bf16.msra.mxu0 %v158
    %194 = vmatprep.subr.bf16.mxu0 0
    %195 = vmatpush1.bf16.msra.mxu0 %v159
    %196 = vmatprep.subr.bf16.mxu0 0
    %197 = vmatpush1.bf16.msra.mxu0 %v160
    %198 = vmatprep.subr.bf16.mxu0 0
    %199 = vmatpush1.bf16.msra.mxu0 %v161
    %200 = vmatprep.subr.bf16.mxu0 0
    %201 = vmatpush1.bf16.msra.mxu0 %v162
    %202 = vmatprep.subr.bf16.mxu0 0
    %203 = vmatpush1.bf16.msra.mxu0 %v163
    %204 = vmatprep.subr.bf16.mxu0 0
    %205 = vmatpush1.bf16.msra.mxu0 %v164
    %206 = vmatprep.subr.bf16.mxu0 0
    %207 = vmatpush1.bf16.msra.mxu0 %v165
    %208 = vmatprep.subr.bf16.mxu0 0
    %209 = vmatpush1.bf16.msra.mxu0 %v166
    %210 = vmatprep.subr.bf16.mxu0 0
    %211 = vmatpush1.bf16.msra.mxu0 %v167
    %212 = vmatprep.subr.bf16.mxu0 0
    %213 = vmatpush1.bf16.msra.mxu0 %v168
    %214 = vmatprep.subr.bf16.mxu0 0
    %215 = vmatpush1.bf16.msra.mxu0 %v169
    %216 = vmatprep.subr.bf16.mxu0 0
    %217 = vmatpush1.bf16.msra.mxu0 %v170
    %218 = vmatprep.subr.bf16.mxu0 0
    %219 = vmatpush1.bf16.msra.mxu0 %v171
    %220 = vmatprep.mubr.bf16.mxu0 %v91
    %221 = vmatmul.mubr.bf16.gmra.mrb[0].mxu0 %v90
    %v222 = vpop.f32.mrb[0].mxu0
    %v223 = vadd.f32 %v89, %v222
    %v224 = vpop.f32.mrb[0].mxu0
    %v225 = vpop.f32.mrb[0].mxu0
    %v226 = vpop.f32.mrb[0].mxu0
    %227 = vdwg.mxu0
    %v228 = vmax.f32 %v223, 0.0
    %v229 = vld [vmem:[#allocation5 + $0x100] sm:$0xf]
    %v230 = vld [vmem:[#allocation5 + $0x108] sm:$0xf]
    %v231 = vld [vmem:[#allocation5 + $0x110] sm:$0xf]
    %v232 = vld [vmem:[#allocation5 + $0x118] sm:$0xf]
    %v233 = vld [vmem:[#allocation5 + $0x120] sm:$0xf]
    %v234 = vld [vmem:[#allocation5 + $0x128] sm:$0xf]
    %v235 = vld [vmem:[#allocation5 + $0x130] sm:$0xf]
    %v236 = vld [vmem:[#allocation5 + $0x138] sm:$0xf]
    %v237 = vld [vmem:[#allocation5 + $0x140] sm:$0xf]
    %v238 = vld [vmem:[#allocation5 + $0x148] sm:$0xf]
    %v239 = vld [vmem:[#allocation5 + $0x150] sm:$0xf]
    %v240 = vld [vmem:[#allocation5 + $0x158] sm:$0xf]
    %v241 = vld [vmem:[#allocation5 + $0x160] sm:$0xf]
    %v242 = vld [vmem:[#allocation5 + $0x168] sm:$0xf]
    %v243 = vld [vmem:[#allocation5 + $0x170] sm:$0xf]
    %v244 = vld [vmem:[#allocation5 + $0x178] sm:$0xf]
    %v245 = vld [vmem:[#allocation7 + $0x1] ss:$0 sm:$0xff]
    %v246 = vpack.c.bf16 %v228, %v228
    %v263 = vunpack.c.l.b16 %v229
    %v264 = vunpack.c.l.b16 %v230
    %v265 = vunpack.c.l.b16 %v231
    %v266 = vunpack.c.l.b16 %v232
    %v267 = vunpack.c.l.b16 %v233
    %v268 = vunpack.c.l.b16 %v234
    %v269 = vunpack.c.l.b16 %v235
    %v270 = vunpack.c.l.b16 %v236
    %v271 = vunpack.c.l.b16 %v237
    %v272 = vunpack.c.l.b16 %v238
    %v273 = vunpack.c.l.b16 %v239
    %v274 = vunpack.c.l.b16 %v240
    %v275 = vunpack.c.l.b16 %v241
    %v276 = vunpack.c.l.b16 %v242
    %v277 = vunpack.c.l.b16 %v243
    %v278 = vunpack.c.l.b16 %v244
    %v279 = vpack.c.b16 %v264, %v263
    %v280 = vpack.c.b16 %v266, %v265
    %v281 = vpack.c.b16 %v268, %v267
    %v282 = vpack.c.b16 %v270, %v269
    %v283 = vpack.c.b16 %v272, %v271
    %v284 = vpack.c.b16 %v274, %v273
    %v285 = vpack.c.b16 %v276, %v275
    %v286 = vpack.c.b16 %v278, %v277
    %295 = vmatprep.subr.bf16.mxu0 0
    %296 = vmatpush1.bf16.msra.mxu0 %v279
    %297 = vmatprep.subr.bf16.mxu0 0
    %298 = vmatpush1.bf16.msra.mxu0 %v280
    %299 = vmatprep.subr.bf16.mxu0 0
    %300 = vmatpush1.bf16.msra.mxu0 %v281
    %301 = vmatprep.subr.bf16.mxu0 0
    %302 = vmatpush1.bf16.msra.mxu0 %v282
    %303 = vmatprep.subr.bf16.mxu0 0
    %304 = vmatpush1.bf16.msra.mxu0 %v283
    %305 = vmatprep.subr.bf16.mxu0 0
    %306 = vmatpush1.bf16.msra.mxu0 %v284
    %307 = vmatprep.subr.bf16.mxu0 0
    %308 = vmatpush1.bf16.msra.mxu0 %v285
    %309 = vmatprep.subr.bf16.mxu0 0
    %310 = vmatpush1.bf16.msra.mxu0 %v286
    %311 = vmatprep.subr.bf16.mxu0 0
    %312 = vmatpush1.bf16.msra.mxu0 0
    %313 = vmatprep.subr.bf16.mxu0 0
    %314 = vmatpush1.bf16.msra.mxu0 0
    %315 = vmatprep.subr.bf16.mxu0 0
    %316 = vmatpush1.bf16.msra.mxu0 0
    %317 = vmatprep.subr.bf16.mxu0 0
    %318 = vmatpush1.bf16.msra.mxu0 0
    %319 = vmatprep.subr.bf16.mxu0 0
    %320 = vmatpush1.bf16.msra.mxu0 0
    %321 = vmatprep.subr.bf16.mxu0 0
    %322 = vmatpush1.bf16.msra.mxu0 0
    %323 = vmatprep.subr.bf16.mxu0 0
    %324 = vmatpush1.bf16.msra.mxu0 0
    %325 = vmatprep.subr.bf16.mxu0 0
    %326 = vmatpush1.bf16.msra.mxu0 0
    %327 = vmatprep.mubr.bf16.mxu0 0
    %328 = vmatmul.mubr.bf16.gmra.mrb[0].mxu0 %v246
    %v329 = vpop.f32.mrb[0].mxu0
    %v330 = vadd.f32 %v245, %v329
    %v331 = vpop.f32.mrb[0].mxu0
    %v332 = vpop.f32.mrb[0].mxu0
    %v333 = vpop.f32.mrb[0].mxu0
    %334 = vdwg.mxu0
    %v335 = vmax.f32 %v330, 0.0
    %v336 = vld [vmem:[#allocation5 + $0x180] sm:$0xf]
    %v337 = vld [vmem:[#allocation5 + $0x188] sm:$0xf]
    %v338 = vld [vmem:[#allocation5 + $0x190] sm:$0xf]
    %v339 = vld [vmem:[#allocation5 + $0x198] sm:$0xf]
    %v340 = vld [vmem:[#allocation5 + $0x1a0] sm:$0xf]
    %v341 = vld [vmem:[#allocation5 + $0x1a8] sm:$0xf]
    %v342 = vld [vmem:[#allocation5 + $0x1b0] sm:$0xf]
    %v343 = vld [vmem:[#allocation5 + $0x1b8] sm:$0xf]
    %v344 = vld [vmem:[#allocation7 + $0x2] ss:$0 sm:$0xff]
    %v345 = vpack.c.bf16 %v335, %v335
    %v354 = vunpack.c.l.b16 %v336
    %v355 = vunpack.c.l.b16 %v337
    %v356 = vunpack.c.l.b16 %v338
    %v357 = vunpack.c.l.b16 %v339
    %v358 = vunpack.c.l.b16 %v340
    %v359 = vunpack.c.l.b16 %v341
    %v360 = vunpack.c.l.b16 %v342
    %v361 = vunpack.c.l.b16 %v343
    %v362 = vpack.c.b16 %v355, %v354
    %v363 = vpack.c.b16 %v357, %v356
    %v364 = vpack.c.b16 %v359, %v358
    %v365 = vpack.c.b16 %v361, %v360
    %vm370 = vcmask 523264
    %v372 = vsel %vm370, %v345, 0
    %374 = vmatprep.subr.bf16.mxu0 0
    %375 = vmatpush1.bf16.msra.mxu0 %v362
    %376 = vmatprep.subr.bf16.mxu0 0
    %377 = vmatpush1.bf16.msra.mxu0 %v363
    %378 = vmatprep.subr.bf16.mxu0 0
    %379 = vmatpush1.bf16.msra.mxu0 %v364
    %380 = vmatprep.subr.bf16.mxu0 0
    %381 = vmatpush1.bf16.msra.mxu0 %v365
    %382 = vmatprep.subr.bf16.mxu0 0
    %383 = vmatpush1.bf16.msra.mxu0 0
    %384 = vmatprep.subr.bf16.mxu0 0
    %385 = vmatpush1.bf16.msra.mxu0 0
    %386 = vmatprep.subr.bf16.mxu0 0
    %387 = vmatpush1.bf16.msra.mxu0 0
    %388 = vmatprep.subr.bf16.mxu0 0
    %389 = vmatpush1.bf16.msra.mxu0 0
    %390 = vmatprep.subr.bf16.mxu0 0
    %391 = vmatpush1.bf16.msra.mxu0 0
    %392 = vmatprep.subr.bf16.mxu0 0
    %393 = vmatpush1.bf16.msra.mxu0 0
    %394 = vmatprep.subr.bf16.mxu0 0
    %395 = vmatpush1.bf16.msra.mxu0 0
    %396 = vmatprep.subr.bf16.mxu0 0
    %397 = vmatpush1.bf16.msra.mxu0 0
    %398 = vmatprep.subr.bf16.mxu0 0
    %399 = vmatpush1.bf16.msra.mxu0 0
    %400 = vmatprep.subr.bf16.mxu0 0
    %401 = vmatpush1.bf16.msra.mxu0 0
    %402 = vmatprep.subr.bf16.mxu0 0
    %403 = vmatpush1.bf16.msra.mxu0 0
    %404 = vmatprep.subr.bf16.mxu0 0
    %405 = vmatpush1.bf16.msra.mxu0 0
    %406 = vmatprep.mubr.bf16.mxu0 0
    %407 = vmatmul.mubr.bf16.gmra.mrb[0].mxu0 %v372
    %v408 = vpop.f32.mrb[0].mxu0
    %v409 = vadd.f32 %v344, %v408
    %v410 = vpop.f32.mrb[0].mxu0
    %v411 = vpop.f32.mrb[0].mxu0
    %v412 = vpop.f32.mrb[0].mxu0
    %413 = vdwg.mxu0
    %v414 = vmax.f32 %v409, 0.0
    %v415 = vld [vmem:[#allocation5 + $0x1c0] sm:$0xf]
    %v416 = vld [vmem:[#allocation5 + $0x1c8] sm:$0xf]
    %v417 = vld [vmem:[#allocation5 + $0x1d0] sm:$0xf]
    %v418 = vld [vmem:[#allocation5 + $0x1d8] sm:$0xf]
    %v419 = vld [vmem:[#allocation7 + $0x3] ss:$0 sm:$0xff]
    %v420 = vpack.c.bf16 %v414, %v414
    %v425 = vunpack.c.l.b16 %v415
    %v426 = vunpack.c.l.b16 %v416
    %v427 = vunpack.c.l.b16 %v417
    %v428 = vunpack.c.l.b16 %v418
    %v429 = vpack.c.b16 %v426, %v425
    %v430 = vpack.c.b16 %v428, %v427
    %vm433 = vcmask 261120
    %v435 = vsel %vm433, %v420, 0
    %437 = vmatprep.subr.bf16.mxu0 0
    %438 = vmatpush1.bf16.msra.mxu0 %v429
    %439 = vmatprep.subr.bf16.mxu0 0
    %440 = vmatpush1.bf16.msra.mxu0 %v430
    %441 = vmatprep.subr.bf16.mxu0 0
    %442 = vmatpush1.bf16.msra.mxu0 0
    %443 = vmatprep.subr.bf16.mxu0 0
    %444 = vmatpush1.bf16.msra.mxu0 0
    %445 = vmatprep.subr.bf16.mxu0 0
    %446 = vmatpush1.bf16.msra.mxu0 0
    %447 = vmatprep.subr.bf16.mxu0 0
    %448 = vmatpush1.bf16.msra.mxu0 0
    %449 = vmatprep.subr.bf16.mxu0 0
    %450 = vmatpush1.bf16.msra.mxu0 0
    %451 = vmatprep.subr.bf16.mxu0 0
    %452 = vmatpush1.bf16.msra.mxu0 0
    %453 = vmatprep.subr.bf16.mxu0 0
    %454 = vmatpush1.bf16.msra.mxu0 0
    %455 = vmatprep.subr.bf16.mxu0 0
    %456 = vmatpush1.bf16.msra.mxu0 0
    %457 = vmatprep.subr.bf16.mxu0 0
    %458 = vmatpush1.bf16.msra.mxu0 0
    %459 = vmatprep.subr.bf16.mxu0 0
    %460 = vmatpush1.bf16.msra.mxu0 0
    %461 = vmatprep.subr.bf16.mxu0 0
    %462 = vmatpush1.bf16.msra.mxu0 0
    %463 = vmatprep.subr.bf16.mxu0 0
    %464 = vmatpush1.bf16.msra.mxu0 0
    %465 = vmatprep.subr.bf16.mxu0 0
    %466 = vmatpush1.bf16.msra.mxu0 0
    %467 = vmatprep.subr.bf16.mxu0 0
    %468 = vmatpush1.bf16.msra.mxu0 0
    %469 = vmatprep.mubr.bf16.mxu0 0
    %470 = vmatmul.mubr.bf16.gmra.mrb[0].mxu0 %v435
    %v471 = vpop.f32.mrb[0].mxu0
    %v472 = vadd.f32 %v419, %v471
    %v473 = vpop.f32.mrb[0].mxu0
    %v474 = vpop.f32.mrb[0].mxu0
    %v475 = vpop.f32.mrb[0].mxu0
    %476 = vdwg.mxu0
    %v477 = vld [vmem:[#allocation7 + $0x10] ss:$0 sm:$0xff]
    %v478 = vld [vmem:[#allocation7 + $0x11] ss:$0 sm:$0xff]
    %vm479 = vcmask 130048
    %v480 = vsel %vm479, %v472, 0.0
    %481 = vadd.xlane.f32.xlu0 %v480
    %v482 = vpop.xlane.xlu0 %481
    %v483 = vrcp.pop 16.0
    %v484 = vmul.f32 %v482, %v483
    %v485 = vsub.f32 %v472, %v484
    %v486 = vmul.f32 %v485, %v485
    %v487 = vsel %vm479, %v486, 0.0
    %488 = vadd.xlane.f32.xlu0 %v487
    %v489 = vpop.xlane.xlu0 %488
    %v490 = vmul.f32 %v489, %v483
    %v491 = vadd.f32 %v490, 1e-05
    %v492 = vrsqrt.pop %v491
    %v493 = vmul.f32 %v485, %v492
    %v494 = vmul.f32 %v493, %v477
    %v495 = vadd.f32 %v494, %v478
    %v496 = vld [vmem:[#allocation5 + $0x1e0] sm:$0xf]
    %v497 = vld [vmem:[#allocation5 + $0x1e8] sm:$0xf]
    %v498 = vld [vmem:[#allocation7 + $0x4] ss:$0 sm:$0xff]
    %v499 = vpack.c.bf16 %v495, %v495
    %v502 = vunpack.c.l.b16 %v496
    %v503 = vunpack.c.l.b16 %v497
    %v504 = vpack.c.b16 %v503, %v502
    %v507 = vsel %vm479, %v499, 0
    %509 = vmatprep.subr.bf16.mxu0 0
    %510 = vmatpush1.bf16.msra.mxu0 %v504
    %511 = vmatprep.subr.bf16.mxu0 0
    %512 = vmatpush1.bf16.msra.mxu0 0
    %513 = vmatprep.subr.bf16.mxu0 0
    %514 = vmatpush1.bf16.msra.mxu0 0
    %515 = vmatprep.subr.bf16.mxu0 0
    %516 = vmatpush1.bf16.msra.mxu0 0
    %517 = vmatprep.subr.bf16.mxu0 0
    %518 = vmatpush1.bf16.msra.mxu0 0
    %519 = vmatprep.subr.bf16.mxu0 0
    %520 = vmatpush1.bf16.msra.mxu0 0
    %521 = vmatprep.subr.bf16.mxu0 0
    %522 = vmatpush1.bf16.msra.mxu0 0
    %523 = vmatprep.subr.bf16.mxu0 0
    %524 = vmatpush1.bf16.msra.mxu0 0
    %525 = vmatprep.subr.bf16.mxu0 0
    %526 = vmatpush1.bf16.msra.mxu0 0
    %527 = vmatprep.subr.bf16.mxu0 0
    %528 = vmatpush1.bf16.msra.mxu0 0
    %529 = vmatprep.subr.bf16.mxu0 0
    %530 = vmatpush1.bf16.msra.mxu0 0
    %531 = vmatprep.subr.bf16.mxu0 0
    %532 = vmatpush1.bf16.msra.mxu0 0
    %533 = vmatprep.subr.bf16.mxu0 0
    %534 = vmatpush1.bf16.msra.mxu0 0
    %535 = vmatprep.subr.bf16.mxu0 0
    %536 = vmatpush1.bf16.msra.mxu0 0
    %537 = vmatprep.subr.bf16.mxu0 0
    %538 = vmatpush1.bf16.msra.mxu0 0
    %539 = vmatprep.subr.bf16.mxu0 0
    %540 = vmatpush1.bf16.msra.mxu0 0
    %541 = vmatprep.mubr.bf16.mxu0 0
    %542 = vmatmul.mubr.bf16.gmra.mrb[0].mxu0 %v507
    %v543 = vpop.f32.mrb[0].mxu0
    %v544 = vadd.f32 %v498, %v543
    %v545 = vpop.f32.mrb[0].mxu0
    %v546 = vpop.f32.mrb[0].mxu0
    %v547 = vpop.f32.mrb[0].mxu0
    %548 = vdwg.mxu0
    %v549 = vmax.f32 %v544, 0.0
    %v550 = vld [vmem:[#allocation5 + $0x1f0] sm:$0xf]
    %v551 = vld [vmem:[#allocation5 + $0x1f8] sm:$0xf]
    %v552 = vld [vmem:[#allocation5 + $0x200] sm:$0xf]
    %v553 = vld [vmem:[#allocation5 + $0x208] sm:$0xf]
    %v554 = vld [vmem:[#allocation7 + $0x5] ss:$0 sm:$0xff]
    %v555 = vpack.c.bf16 %v549, %v549
    %v560 = vunpack.c.l.b16 %v550
    %v561 = vunpack.c.l.b16 %v551
    %v562 = vunpack.c.l.b16 %v552
    %v563 = vunpack.c.l.b16 %v553
    %v564 = vpack.c.b16 %v561, %v560
    %v565 = vpack.c.b16 %v563, %v562
    %v569 = vsel %vm433, %v555, 0
    %571 = vmatprep.subr.bf16.mxu0 0
    %572 = vmatpush1.bf16.msra.mxu0 %v564
    %573 = vmatprep.subr.bf16.mxu0 0
    %574 = vmatpush1.bf16.msra.mxu0 %v565
    %575 = vmatprep.subr.bf16.mxu0 0
    %576 = vmatpush1.bf16.msra.mxu0 0
    %577 = vmatprep.subr.bf16.mxu0 0
    %578 = vmatpush1.bf16.msra.mxu0 0
    %579 = vmatprep.subr.bf16.mxu0 0
    %580 = vmatpush1.bf16.msra.mxu0 0
    %581 = vmatprep.subr.bf16.mxu0 0
    %582 = vmatpush1.bf16.msra.mxu0 0
    %583 = vmatprep.subr.bf16.mxu0 0
    %584 = vmatpush1.bf16.msra.mxu0 0
    %585 = vmatprep.subr.bf16.mxu0 0
    %586 = vmatpush1.bf16.msra.mxu0 0
    %587 = vmatprep.subr.bf16.mxu0 0
    %588 = vmatpush1.bf16.msra.mxu0 0
    %589 = vmatprep.subr.bf16.mxu0 0
    %590 = vmatpush1.bf16.msra.mxu0 0
    %591 = vmatprep.subr.bf16.mxu0 0
    %592 = vmatpush1.bf16.msra.mxu0 0
    %593 = vmatprep.subr.bf16.mxu0 0
    %594 = vmatpush1.bf16.msra.mxu0 0
    %595 = vmatprep.subr.bf16.mxu0 0
    %596 = vmatpush1.bf16.msra.mxu0 0
    %597 = vmatprep.subr.bf16.mxu0 0
    %598 = vmatpush1.bf16.msra.mxu0 0
    %599 = vmatprep.subr.bf16.mxu0 0
    %600 = vmatpush1.bf16.msra.mxu0 0
    %601 = vmatprep.subr.bf16.mxu0 0
    %602 = vmatpush1.bf16.msra.mxu0 0
    %603 = vmatprep.mubr.bf16.mxu0 0
    %604 = vmatmul.mubr.bf16.gmra.mrb[0].mxu0 %v569
    %v605 = vpop.f32.mrb[0].mxu0
    %v606 = vadd.f32 %v554, %v605
    %v607 = vpop.f32.mrb[0].mxu0
    %v608 = vpop.f32.mrb[0].mxu0
    %v609 = vpop.f32.mrb[0].mxu0
    %610 = vdwg.mxu0
    %v611 = vmax.f32 %v606, 0.0
    %v612 = vld [vmem:[#allocation5 + $0x210] sm:$0xf]
    %v613 = vld [vmem:[#allocation5 + $0x218] sm:$0xf]
    %v614 = vld [vmem:[#allocation5 + $0x220] sm:$0xf]
    %v615 = vld [vmem:[#allocation5 + $0x228] sm:$0xf]
    %v616 = vld [vmem:[#allocation5 + $0x230] sm:$0xf]
    %v617 = vld [vmem:[#allocation5 + $0x238] sm:$0xf]
    %v618 = vld [vmem:[#allocation5 + $0x240] sm:$0xf]
    %v619 = vld [vmem:[#allocation5 + $0x248] sm:$0xf]
    %v620 = vld [vmem:[#allocation7 + $0x6] ss:$0 sm:$0xff]
    %v621 = vpack.c.bf16 %v611, %v611
    %v630 = vunpack.c.l.b16 %v612
    %v631 = vunpack.c.l.b16 %v613
    %v632 = vunpack.c.l.b16 %v614
    %v633 = vunpack.c.l.b16 %v615
    %v634 = vunpack.c.l.b16 %v616
    %v635 = vunpack.c.l.b16 %v617
    %v636 = vunpack.c.l.b16 %v618
    %v637 = vunpack.c.l.b16 %v619
    %v638 = vpack.c.b16 %v631, %v630
    %v639 = vpack.c.b16 %v633, %v632
    %v640 = vpack.c.b16 %v635, %v634
    %v641 = vpack.c.b16 %v637, %v636
    %v647 = vsel %vm370, %v621, 0
    %649 = vmatprep.subr.bf16.mxu0 0
    %650 = vmatpush1.bf16.msra.mxu0 %v638
    %651 = vmatprep.subr.bf16.mxu0 0
    %652 = vmatpush1.bf16.msra.mxu0 %v639
    %653 = vmatprep.subr.bf16.mxu0 0
    %654 = vmatpush1.bf16.msra.mxu0 %v640
    %655 = vmatprep.subr.bf16.mxu0 0
    %656 = vmatpush1.bf16.msra.mxu0 %v641
    %657 = vmatprep.subr.bf16.mxu0 0
    %658 = vmatpush1.bf16.msra.mxu0 0
    %659 = vmatprep.subr.bf16.mxu0 0
    %660 = vmatpush1.bf16.msra.mxu0 0
    %661 = vmatprep.subr.bf16.mxu0 0
    %662 = vmatpush1.bf16.msra.mxu0 0
    %663 = vmatprep.subr.bf16.mxu0 0
    %664 = vmatpush1.bf16.msra.mxu0 0
    %665 = vmatprep.subr.bf16.mxu0 0
    %666 = vmatpush1.bf16.msra.mxu0 0
    %667 = vmatprep.subr.bf16.mxu0 0
    %668 = vmatpush1.bf16.msra.mxu0 0
    %669 = vmatprep.subr.bf16.mxu0 0
    %670 = vmatpush1.bf16.msra.mxu0 0
    %671 = vmatprep.subr.bf16.mxu0 0
    %672 = vmatpush1.bf16.msra.mxu0 0
    %673 = vmatprep.subr.bf16.mxu0 0
    %674 = vmatpush1.bf16.msra.mxu0 0
    %675 = vmatprep.subr.bf16.mxu0 0
    %676 = vmatpush1.bf16.msra.mxu0 0
    %677 = vmatprep.subr.bf16.mxu0 0
    %678 = vmatpush1.bf16.msra.mxu0 0
    %679 = vmatprep.subr.bf16.mxu0 0
    %680 = vmatpush1.bf16.msra.mxu0 0
    %681 = vmatprep.mubr.bf16.mxu0 0
    %682 = vmatmul.mubr.bf16.gmra.mrb[0].mxu0 %v647
    %v683 = vpop.f32.mrb[0].mxu0
    %v684 = vadd.f32 %v620, %v683
    %v685 = vpop.f32.mrb[0].mxu0
    %v686 = vpop.f32.mrb[0].mxu0
    %v687 = vpop.f32.mrb[0].mxu0
    %688 = vdwg.mxu0
    %v689 = vmax.f32 %v684, 0.0
    %v690 = vld [vmem:[#allocation5 + $0x250] sm:$0xff]
    %v691 = vld [vmem:[#allocation5 + $0x258] sm:$0xff]
    %v692 = vld [vmem:[#allocation5 + $0x260] sm:$0xff]
    %v693 = vld [vmem:[#allocation5 + $0x268] sm:$0xff]
    %v694 = vld [vmem:[#allocation5 + $0x270] sm:$0xff]
    %v695 = vld [vmem:[#allocation5 + $0x278] sm:$0xff]
    %v696 = vld [vmem:[#allocation5 + $0x280] sm:$0xff]
    %v697 = vld [vmem:[#allocation5 + $0x288] sm:$0xff]
    %v698 = vld [vmem:[#allocation5 + $0x290] sm:$0xff]
    %v699 = vld [vmem:[#allocation5 + $0x298] sm:$0xff]
    %v700 = vld [vmem:[#allocation5 + $0x2a0] sm:$0xff]
    %v701 = vld [vmem:[#allocation5 + $0x2a8] sm:$0xff]
    %v702 = vld [vmem:[#allocation5 + $0x2b0] sm:$0xff]
    %v703 = vld [vmem:[#allocation5 + $0x2b8] sm:$0xff]
    %v704 = vld [vmem:[#allocation5 + $0x2c0] sm:$0xff]
    %v705 = vld [vmem:[#allocation5 + $0x2c8] sm:$0xff]
    %s706 = scalar_lea.vmem [#allocation7], 7
    %v707 = vld [vmem:[%s706] ss:$8 sm:$0x3]
    %v708 = vpack.c.bf16 %v689, %v689
    %v710 = vlaneseq
    %v711 = vshrl.u32 %v710, 7
    %v712 = vsub.s32 0, %v711
    %v713 = vrot.slane %v707, %v712
    %v714 = vlaneseq
    %v715 = vshrl.u32 %v714, 7
    %v716 = vsub.s32 1, %v715
    %v717 = vrot.slane %v707, %v716
    %v736 = vunpack.c.l.b16 %v690
    %v737 = vunpack.c.h.b16 %v690
    %v738 = vunpack.c.l.b16 %v691
    %v739 = vunpack.c.h.b16 %v691
    %v740 = vunpack.c.l.b16 %v692
    %v741 = vunpack.c.h.b16 %v692
    %v742 = vunpack.c.l.b16 %v693
    %v743 = vunpack.c.h.b16 %v693
    %v744 = vunpack.c.l.b16 %v694
    %v745 = vunpack.c.h.b16 %v694
    %v746 = vunpack.c.l.b16 %v695
    %v747 = vunpack.c.h.b16 %v695
    %v748 = vunpack.c.l.b16 %v696
    %v749 = vunpack.c.h.b16 %v696
    %v750 = vunpack.c.l.b16 %v697
    %v751 = vunpack.c.h.b16 %v697
    %v752 = vunpack.c.l.b16 %v698
    %v753 = vunpack.c.h.b16 %v698
    %v754 = vunpack.c.l.b16 %v699
    %v755 = vunpack.c.h.b16 %v699
    %v756 = vunpack.c.l.b16 %v700
    %v757 = vunpack.c.h.b16 %v700
    %v758 = vunpack.c.l.b16 %v701
    %v759 = vunpack.c.h.b16 %v701
    %v760 = vunpack.c.l.b16 %v702
    %v761 = vunpack.c.h.b16 %v702
    %v762 = vunpack.c.l.b16 %v703
    %v763 = vunpack.c.h.b16 %v703
    %v764 = vunpack.c.l.b16 %v704
    %v765 = vunpack.c.h.b16 %v704
    %v766 = vunpack.c.l.b16 %v705
    %v767 = vunpack.c.h.b16 %v705
    %v768 = vpack.c.b16 %v738, %v736
    %v769 = vpack.c.b16 %v739, %v737
    %v770 = vpack.c.b16 %v742, %v740
    %v771 = vpack.c.b16 %v743, %v741
    %v772 = vpack.c.b16 %v746, %v744
    %v773 = vpack.c.b16 %v747, %v745
    %v774 = vpack.c.b16 %v750, %v748
    %v775 = vpack.c.b16 %v751, %v749
    %v776 = vpack.c.b16 %v754, %v752
    %v777 = vpack.c.b16 %v755, %v753
    %v778 = vpack.c.b16 %v758, %v756
    %v779 = vpack.c.b16 %v759, %v757
    %v780 = vpack.c.b16 %v762, %v760
    %v781 = vpack.c.b16 %v763, %v761
    %v782 = vpack.c.b16 %v766, %v764
    %v783 = vpack.c.b16 %v767, %v765
    %800 = vmatprep.subr.bf16.mxu0 %v769
    %801 = vmatpush1.bf16.msra.mxu0 %v768
    %802 = vmatprep.subr.bf16.mxu0 %v771
    %803 = vmatpush1.bf16.msra.mxu0 %v770
    %804 = vmatprep.subr.bf16.mxu0 %v773
    %805 = vmatpush1.bf16.msra.mxu0 %v772
    %806 = vmatprep.subr.bf16.mxu0 %v775
    %807 = vmatpush1.bf16.msra.mxu0 %v774
    %808 = vmatprep.subr.bf16.mxu0 %v777
    %809 = vmatpush1.bf16.msra.mxu0 %v776
    %810 = vmatprep.subr.bf16.mxu0 %v779
    %811 = vmatpush1.bf16.msra.mxu0 %v778
    %812 = vmatprep.subr.bf16.mxu0 %v781
    %813 = vmatpush1.bf16.msra.mxu0 %v780
    %814 = vmatprep.subr.bf16.mxu0 %v783
    %815 = vmatpush1.bf16.msra.mxu0 %v782
    %816 = vmatprep.subr.bf16.mxu0 0
    %817 = vmatpush1.bf16.msra.mxu0 0
    %818 = vmatprep.subr.bf16.mxu0 0
    %819 = vmatpush1.bf16.msra.mxu0 0
    %820 = vmatprep.subr.bf16.mxu0 0
    %821 = vmatpush1.bf16.msra.mxu0 0
    %822 = vmatprep.subr.bf16.mxu0 0
    %823 = vmatpush1.bf16.msra.mxu0 0
    %824 = vmatprep.subr.bf16.mxu0 0
    %825 = vmatpush1.bf16.msra.mxu0 0
    %826 = vmatprep.subr.bf16.mxu0 0
    %827 = vmatpush1.bf16.msra.mxu0 0
    %828 = vmatprep.subr.bf16.mxu0 0
    %829 = vmatpush1.bf16.msra.mxu0 0
    %830 = vmatprep.subr.bf16.mxu0 0
    %831 = vmatpush1.bf16.msra.mxu0 0
    %832 = vmatprep.mubr.bf16.mxu0 0
    %833 = vmatmul.mubr.bf16.gmra.mrb[0].mxu0 %v708
    %v834 = vpop.f32.mrb[0].mxu0
    %v835 = vadd.f32 %v713, %v834
    %v836 = vpop.f32.mrb[0].mxu0
    %v837 = vadd.f32 %v717, %v836
    %v838 = vpop.f32.mrb[0].mxu0
    %v839 = vpop.f32.mrb[0].mxu0
    %840 = vdwg.mxu0
    %v841 = vmax.f32 %v835, %v837
    %842 = vmax.xlane.f32.xlu0 %v841
    %v843 = vpop.xlane.xlu0 %842
    %v844 = vsub.f32 %v835, %v843
    %v845 = vsub.f32 %v837, %v843
    %v846 = vmul.f32 %v844, 1.442695
    %v847 = vpow.pop %v846
    %v848 = vmul.f32 %v845, 1.442695
    %v849 = vpow.pop %v848
    %v850 = vadd.f32 %v847, %v849
    %851 = vadd.xlane.f32.xlu0 %v850
    %v852 = vpop.xlane.xlu0 %851
    %v853 = vrcp.pop %v852
    %v854 = vmul.f32 %v852, %v853
    %v855 = vsub.f32 2.0, %v854
    %v856 = vmul.f32 %v853, %v855
    %v857 = vmul.f32 %v847, %v856
    %v858 = vmul.f32 %v849, %v856
    %859 = vst [vmem:[#allocation8] sm:$0xff] %v857
    %860 = vst [vmem:[#allocation8 + $0x8] sm:$0xff] %v858
    // Predicated region
    $region26: #{tpu_custom_call.1} parent=1 // pred_check
      _
    $region27: #{tpu_custom_call.1} parent=1 // pred_check_branch
      %862 = sbr.rel (0) target = $region29
    $region28: #{tpu_custom_call.1} parent=1 // pred_region
      %s864 = ssub.s32 256, 256
      %865 = vsyncadd [#allocation4], %s864
      %s867 = sshll.u32 [#allocation8], 4
      %s868 = int_to_ptr.vmem [resolvable:$true] %s867
      %870 = dma.vmem_to_hbm [thread:$0]  %s868, 256, %s3, [#allocation4]
    $region29: #{tpu_custom_call.1} parent=1 // pred_fallthru
      _
    // Predicated region
    $region30: #{tpu_custom_call.1} parent=1 // pred_check
      _
    $region31: #{tpu_custom_call.1} parent=1 // pred_check_branch
      %872 = sbr.rel (0) target = $region33
    $region32: #{tpu_custom_call.1} parent=1 // pred_region
      %873 = dma.done [#allocation4], 256
    $region33: #{tpu_custom_call.1} parent=1 // pred_fallthru
      _
    %874 = vsyncpa [#allocation3], 1
    %875 = vsyncpa [#allocation6], 1
    %876 = vsyncpa [#allocation4], 1

</llo_original>
